<compile_context>
chip_gen: v5e
topology: v5e:2x2
jax: 0.10.0
libtpu: 0.0.40
codegen_flags: <defaults>
</compile_context>

<pallas_src>
import functools

import jax
import jax.numpy as jnp
from jax import lax
from jax.experimental import pallas as pl
from jax.experimental.pallas import tpu as pltpu

LANES = 128          # lane tile (fixed by vreg layout)
SUB_M = 256          # rows per in-kernel sub-chunk (bounds vreg working set)
MAX_TILE_M = 8192    # rows per grid-step DMA block (4 MiB f32 per input)
NUM_SPLITS = 2       # leading "parallel" grid axis (2 TCs on v7x, loop on v5e/v6e)
_LN2 = 0.6931471805599453


def _round_up(x, m):
    return ((x + m - 1) // m) * m


def _logcosh_sums_kernel(p_ref, t_ref, se_ref, slc_ref, cc_ref, *,
                         n_rows, tile_m, sub_m, num_sub, bps, unroll):
    c = pl.program_id(0)   # core split
    j = pl.program_id(1)   # block within this split (reduction axis)

    # Output blocks stay resident across j (same out block index), so they are
    # the accumulators: init on the first block of each split.
    @pl.when(j == 0)
    def _():
        se_ref[...] = jnp.zeros_like(se_ref)
        slc_ref[...] = jnp.zeros_like(slc_ref)
        cc_ref[...] = jnp.zeros_like(cc_ref)

    blk = c * bps + j  # logical row-block index (unclamped; used for masking)

    # Hoisted out of the sub-chunk loop (JAX does not CSE broadcast_in_dim).
    row_iota = lax.broadcasted_iota(jnp.int32, (sub_m, LANES), 0)

    def fold(x):
        # (sub_m, 128) -> (8, 128): pure vreg-wise VALU adds, no XLU reduce.
        return jnp.sum(x.reshape(sub_m // 8, 8, LANES), axis=0)

    def body(s, carry):
        a_se, a_slc, a_cc = carry
        start = pl.multiple_of(s * sub_m, 8)
        # Native-dtype load, upcast to f32 in-register.
        p = p_ref[pl.ds(start, sub_m), :].astype(jnp.float32)
        t = t_ref[pl.ds(start, sub_m), :].astype(jnp.float32)

        # Row-validity mask: rows at or past n_rows are tail padding / OOB
        # garbage from partial or overflow blocks -> contribute exactly 0.
        rows_left = n_rows - (blk * tile_m + s * sub_m)
        valid = row_iota < rows_left

        err = jnp.where(valid, p - t, 0.0)        # select blocks NaN garbage
        cond_f = ((p > t) & valid).astype(jnp.float32)

        # Stable logcosh for err >= 0; gate with a multiply (0 * finite == 0).
        err_pos = jnp.maximum(err, 0.0)
        lc = (err_pos + jnp.log(1.0 + jnp.exp(-2.0 * err_pos)) - _LN2) * cond_f

        return (a_se + fold(err * err),
                a_slc + fold(lc),
                a_cc + fold(cond_f))

    zeros = jnp.zeros((8, LANES), jnp.float32)
    a_se, a_slc, a_cc = lax.fori_loop(0, num_sub, body, (zeros, zeros, zeros),
                                      unroll=unroll)

    se_ref[...] += a_se
    slc_ref[...] += a_slc
    cc_ref[...] += a_cc


def custom_log_cosh_loss(predictions, targets):
    assert predictions.shape == targets.shape
    n = int(predictions.size)

    p = predictions.reshape(-1)
    t = targets.reshape(-1)

    # Rows of the (rows, 128) streaming view. Only a sub-128 tail (or a tiny
    # <1024-element input) ever triggers a pad copy; typical shapes skip it.
    n_rows = -(-n // LANES)
    arr_rows = max(n_rows, 8)
    padded = arr_rows * LANES
    if padded != n:
        # TODO(synk): sub-128 tail still costs one small XLA pad copy.
        p = jnp.pad(p, (0, padded - n))
        t = jnp.pad(t, (0, padded - n))
    p2 = p.reshape(arr_rows, LANES)
    t2 = t.reshape(arr_rows, LANES)

    # Adaptive tiling: big DMA blocks, fixed-size in-kernel sub-chunks.
    rows_per_split = -(-arr_rows // NUM_SPLITS)
    if rows_per_split >= SUB_M:
        tile_m = min(MAX_TILE_M, _round_up(rows_per_split, SUB_M))
        sub_m = SUB_M
    else:
        tile_m = _round_up(rows_per_split, 8)
        sub_m = tile_m
    num_sub = tile_m // sub_m
    total_blocks = -(-arr_rows // tile_m)
    bps = -(-total_blocks // NUM_SPLITS)          # blocks per core split
    unroll = True if num_sub <= 8 else 4

    def in_map(c, j):
        # Clamp so overflow iterations (when total_blocks is odd) re-read the
        # last block; their contribution is fully masked in-kernel.
        return (jnp.minimum(c * bps + j, total_blocks - 1), 0)

    in_spec = pl.BlockSpec((tile_m, LANES), in_map)
    # Each core split writes its own (8,128) partials; summed in JAX glue.
    out_spec = pl.BlockSpec((None, 8, LANES), lambda c, j: (c, 0, 0))

    cost = pl.CostEstimate(
        flops=16 * n,
        transcendentals=2 * n,
        bytes_accessed=n * (predictions.dtype.itemsize + targets.dtype.itemsize)
        + 3 * NUM_SPLITS * 8 * LANES * 4,
    )

    kernel = functools.partial(
        _logcosh_sums_kernel,
        n_rows=n_rows, tile_m=tile_m, sub_m=sub_m, num_sub=num_sub,
        bps=bps, unroll=unroll)

    se, slc, cc = pl.pallas_call(
        kernel,
        grid=(NUM_SPLITS, bps),
        in_specs=[in_spec, in_spec],
        out_specs=[out_spec, out_spec, out_spec],
        out_shape=[jax.ShapeDtypeStruct((NUM_SPLITS, 8, LANES), jnp.float32)] * 3,
        compiler_params=pltpu.CompilerParams(
            dimension_semantics=("parallel", "arbitrary"),
            vmem_limit_bytes=32 * 1024 * 1024),
        cost_estimate=cost,
    )(p2, t2)

    nf = jnp.float32(n)
    se_s = jnp.sum(se)
    slc_s = jnp.sum(slc)
    cc_s = jnp.sum(cc)
    mse = se_s / nf
    # mean(where(cond, lc, 2*mse)) == (sum_{cond} lc + 2*mse*count_{~cond}) / N
    return (slc_s + 2.0 * mse * (nf - cc_s)) / nf


def _reference(predictions, targets):
    error = predictions - targets
    lc_loss = jnp.log(jnp.cosh(error))
    mse_loss = jnp.mean(error ** 2)
    loss = jnp.where(predictions > targets, lc_loss, mse_loss * 2)
    return jnp.mean(loss)


if __name__ == "__main__":
    key = jax.random.PRNGKey(0)
    k1, k2 = jax.random.split(key)
    # Small NCHW-shaped example inputs (the loss itself is shape-agnostic).
    predictions = jax.random.normal(k1, (2, 4, 16, 16), dtype=jnp.float32)
    targets = jax.random.normal(k2, (2, 4, 16, 16), dtype=jnp.float32)

    out = custom_log_cosh_loss(predictions, targets)
    out = jax.block_until_ready(out)

    ref = _reference(predictions, targets)
    assert jnp.allclose(out, ref, rtol=1e-5, atol=1e-5), (out, ref)

    print("KERNEL_OK")
</pallas_src>

<mosaic_0001>
module attributes {stable_mosaic.version = 11 : i64} {
  func.func @_logcosh_sums_kernel(%arg0: i32, %arg1: i32, %arg2: memref<8x128xf32, #tpu.memory_space<vmem>>, %arg3: memref<8x128xf32, #tpu.memory_space<vmem>>, %arg4: memref<1x8x128xf32, #tpu.memory_space<vmem>>, %arg5: memref<1x8x128xf32, #tpu.memory_space<vmem>>, %arg6: memref<1x8x128xf32, #tpu.memory_space<vmem>>) attributes {dimension_semantics = [#tpu.dimension_semantics<parallel>, #tpu.dimension_semantics<arbitrary>], iteration_bounds = array<i64: 2, 1>, scalar_prefetch = 0 : i64, scratch_operands = 0 : i64, tpu.core_type = #tpu.core_type<tc>, window_params = [{transform_indices = @transform_0, window_bounds = array<i64: 8, 128>}, {transform_indices = @transform_1, window_bounds = array<i64: 8, 128>}, {transform_indices = @transform_2, window_bounds = array<i64: 1, 8, 128>}, {transform_indices = @transform_3, window_bounds = array<i64: 1, 8, 128>}, {transform_indices = @transform_4, window_bounds = array<i64: 1, 8, 128>}]} {
    %c0_i32 = arith.constant 0 : i32
    %0 = arith.cmpi eq, %arg1, %c0_i32 : i32
    %1 = arith.extui %0 : i1 to i32
    %c0_i32_0 = arith.constant 0 : i32
    %2 = arith.cmpi ne, %1, %c0_i32_0 : i32
    scf.if %2 {
      %cst_32 = arith.constant 0.000000e+00 : f32
      %66 = vector.broadcast %cst_32 : f32 to vector<8x128xf32>
      %c0_33 = arith.constant 0 : index
      %c0_34 = arith.constant 0 : index
      %c0_35 = arith.constant 0 : index
      %67 = vector.load %arg4[%c0_33, %c0_34, %c0_35] : memref<1x8x128xf32, #tpu.memory_space<vmem>>, vector<1x8x128xf32>
      %68 = vector.shape_cast %67 : vector<1x8x128xf32> to vector<8x128xf32>
      %69 = vector.shape_cast %66 : vector<8x128xf32> to vector<1x8x128xf32>
      tpu.vector_store %arg4[%c0_33, %c0_34, %c0_35], %69 {strides = array<i32>} : memref<1x8x128xf32, #tpu.memory_space<vmem>>, vector<1x8x128xf32>,
      %cst_36 = arith.constant 0.000000e+00 : f32
      %70 = vector.broadcast %cst_36 : f32 to vector<8x128xf32>
      %c0_37 = arith.constant 0 : index
      %c0_38 = arith.constant 0 : index
      %c0_39 = arith.constant 0 : index
      %71 = vector.load %arg5[%c0_37, %c0_38, %c0_39] : memref<1x8x128xf32, #tpu.memory_space<vmem>>, vector<1x8x128xf32>
      %72 = vector.shape_cast %71 : vector<1x8x128xf32> to vector<8x128xf32>
      %73 = vector.shape_cast %70 : vector<8x128xf32> to vector<1x8x128xf32>
      tpu.vector_store %arg5[%c0_37, %c0_38, %c0_39], %73 {strides = array<i32>} : memref<1x8x128xf32, #tpu.memory_space<vmem>>, vector<1x8x128xf32>,
      %cst_40 = arith.constant 0.000000e+00 : f32
      %74 = vector.broadcast %cst_40 : f32 to vector<8x128xf32>
      %c0_41 = arith.constant 0 : index
      %c0_42 = arith.constant 0 : index
      %c0_43 = arith.constant 0 : index
      %75 = vector.load %arg6[%c0_41, %c0_42, %c0_43] : memref<1x8x128xf32, #tpu.memory_space<vmem>>, vector<1x8x128xf32>
      %76 = vector.shape_cast %75 : vector<1x8x128xf32> to vector<8x128xf32>
      %77 = vector.shape_cast %74 : vector<8x128xf32> to vector<1x8x128xf32>
      tpu.vector_store %arg6[%c0_41, %c0_42, %c0_43], %77 {strides = array<i32>} : memref<1x8x128xf32, #tpu.memory_space<vmem>>, vector<1x8x128xf32>,
    } else {
    }
    %c1_i32 = arith.constant 1 : i32
    %3 = arith.muli %arg0, %c1_i32 : i32
    %4 = arith.addi %3, %arg1 : i32
    %5 = tpu.iota {dimensions = array<i32: 0>} : vector<8x128xi32>
    %cst = arith.constant 0.000000e+00 : f32
    %6 = vector.broadcast %cst : f32 to vector<8x128xf32>
    %c0_i32_1 = arith.constant 0 : i32
    %c8_i32 = arith.constant 8 : i32
    %7 = arith.muli %c0_i32_1, %c8_i32 : i32
    %8 = tpu.assume_multiple %7, 8 : i32
    %9 = arith.index_cast %8 : i32 to index
    %c0 = arith.constant 0 : index
    %10 = vector.load %arg2[%9, %c0] : memref<8x128xf32, #tpu.memory_space<vmem>>, vector<8x128xf32>
    %11 = arith.index_cast %8 : i32 to index
    %c0_2 = arith.constant 0 : index
    %12 = vector.load %arg3[%11, %c0_2] : memref<8x128xf32, #tpu.memory_space<vmem>>, vector<8x128xf32>
    %c8_i32_3 = arith.constant 8 : i32
    %13 = arith.muli %4, %c8_i32_3 : i32
    %c8_i32_4 = arith.constant 8 : i32
    %14 = arith.muli %c0_i32_1, %c8_i32_4 : i32
    %15 = arith.addi %13, %14 : i32
    %c16_i32 = arith.constant 16 : i32
    %16 = arith.subi %c16_i32, %15 : i32
    %17 = vector.broadcast %16 : i32 to vector<8x128xi32>
    %18 = arith.cmpi slt, %5, %17 : vector<8x128xi32>
    %19 = arith.subf %10, %12 : vector<8x128xf32>
    %cst_5 = arith.constant 0.000000e+00 : f32
    %20 = vector.broadcast %cst_5 : f32 to vector<8x128xf32>
    %21 = arith.select %18, %19, %20 : vector<8x128xi1>, vector<8x128xf32>
    %22 = arith.cmpf ogt, %10, %12 : vector<8x128xf32>
    %23 = arith.andi %22, %18 : vector<8x128xi1>
    %24 = arith.extui %23 : vector<8x128xi1> to vector<8x128xi32>
    %25 = arith.sitofp %24 : vector<8x128xi32> to vector<8x128xf32>
    %cst_6 = arith.constant 0.000000e+00 : f32
    %26 = vector.broadcast %cst_6 : f32 to vector<8x128xf32>
    %27 = arith.maximumf %21, %26 : vector<8x128xf32>
    %cst_7 = arith.constant -2.000000e+00 : f32
    %28 = vector.broadcast %cst_7 : f32 to vector<8x128xf32>
    %29 = arith.mulf %28, %27 : vector<8x128xf32>
    %30 = math.exp %29 : vector<8x128xf32>
    %cst_8 = arith.constant 1.000000e+00 : f32
    %31 = vector.broadcast %cst_8 : f32 to vector<8x128xf32>
    %32 = arith.addf %31, %30 : vector<8x128xf32>
    %33 = math.log %32 : vector<8x128xf32>
    %34 = arith.addf %27, %33 : vector<8x128xf32>
    %cst_9 = arith.constant 0.693147182 : f32
    %35 = vector.broadcast %cst_9 : f32 to vector<8x128xf32>
    %36 = arith.subf %34, %35 : vector<8x128xf32>
    %37 = arith.mulf %36, %25 : vector<8x128xf32>
    %38 = arith.mulf %21, %21 : vector<8x128xf32>
    %39 = vector.shape_cast %38 : vector<8x128xf32> to vector<1x8x128xf32>
    %cst_10 = arith.constant dense<0.000000e+00> : vector<8x128xf32>
    %40 = vector.multi_reduction <add>, %39, %cst_10 [0] : vector<1x8x128xf32> to vector<8x128xf32>
    %41 = arith.addf %6, %40 : vector<8x128xf32>
    %42 = vector.shape_cast %37 : vector<8x128xf32> to vector<1x8x128xf32>
    %cst_11 = arith.constant dense<0.000000e+00> : vector<8x128xf32>
    %43 = vector.multi_reduction <add>, %42, %cst_11 [0] : vector<1x8x128xf32> to vector<8x128xf32>
    %44 = arith.addf %6, %43 : vector<8x128xf32>
    %45 = vector.shape_cast %25 : vector<8x128xf32> to vector<1x8x128xf32>
    %cst_12 = arith.constant dense<0.000000e+00> : vector<8x128xf32>
    %46 = vector.multi_reduction <add>, %45, %cst_12 [0] : vector<1x8x128xf32> to vector<8x128xf32>
    %47 = arith.addf %6, %46 : vector<8x128xf32>
    %c1_i32_13 = arith.constant 1 : i32
    %c0_14 = arith.constant 0 : index
    %c0_15 = arith.constant 0 : index
    %c0_16 = arith.constant 0 : index
    %48 = vector.load %arg4[%c0_14, %c0_15, %c0_16] : memref<1x8x128xf32, #tpu.memory_space<vmem>>, vector<1x8x128xf32>
    %49 = vector.shape_cast %48 : vector<1x8x128xf32> to vector<8x128xf32>
    %50 = arith.addf %49, %41 : vector<8x128xf32>
    %c0_17 = arith.constant 0 : index
    %c0_18 = arith.constant 0 : index
    %c0_19 = arith.constant 0 : index
    %51 = vector.load %arg4[%c0_17, %c0_18, %c0_19] : memref<1x8x128xf32, #tpu.memory_space<vmem>>, vector<1x8x128xf32>
    %52 = vector.shape_cast %51 : vector<1x8x128xf32> to vector<8x128xf32>
    %53 = vector.shape_cast %50 : vector<8x128xf32> to vector<1x8x128xf32>
    tpu.vector_store %arg4[%c0_17, %c0_18, %c0_19], %53 {strides = array<i32>} : memref<1x8x128xf32, #tpu.memory_space<vmem>>, vector<1x8x128xf32>,
    %c0_20 = arith.constant 0 : index
    %c0_21 = arith.constant 0 : index
    %c0_22 = arith.constant 0 : index
    %54 = vector.load %arg5[%c0_20, %c0_21, %c0_22] : memref<1x8x128xf32, #tpu.memory_space<vmem>>, vector<1x8x128xf32>
    %55 = vector.shape_cast %54 : vector<1x8x128xf32> to vector<8x128xf32>
    %56 = arith.addf %55, %44 : vector<8x128xf32>
    %c0_23 = arith.constant 0 : index
    %c0_24 = arith.constant 0 : index
    %c0_25 = arith.constant 0 : index
    %57 = vector.load %arg5[%c0_23, %c0_24, %c0_25] : memref<1x8x128xf32, #tpu.memory_space<vmem>>, vector<1x8x128xf32>
    %58 = vector.shape_cast %57 : vector<1x8x128xf32> to vector<8x128xf32>
    %59 = vector.shape_cast %56 : vector<8x128xf32> to vector<1x8x128xf32>
    tpu.vector_store %arg5[%c0_23, %c0_24, %c0_25], %59 {strides = array<i32>} : memref<1x8x128xf32, #tpu.memory_space<vmem>>, vector<1x8x128xf32>,
    %c0_26 = arith.constant 0 : index
    %c0_27 = arith.constant 0 : index
    %c0_28 = arith.constant 0 : index
    %60 = vector.load %arg6[%c0_26, %c0_27, %c0_28] : memref<1x8x128xf32, #tpu.memory_space<vmem>>, vector<1x8x128xf32>
    %61 = vector.shape_cast %60 : vector<1x8x128xf32> to vector<8x128xf32>
    %62 = arith.addf %61, %47 : vector<8x128xf32>
    %c0_29 = arith.constant 0 : index
    %c0_30 = arith.constant 0 : index
    %c0_31 = arith.constant 0 : index
    %63 = vector.load %arg6[%c0_29, %c0_30, %c0_31] : memref<1x8x128xf32, #tpu.memory_space<vmem>>, vector<1x8x128xf32>
    %64 = vector.shape_cast %63 : vector<1x8x128xf32> to vector<8x128xf32>
    %65 = vector.shape_cast %62 : vector<8x128xf32> to vector<1x8x128xf32>
    tpu.vector_store %arg6[%c0_29, %c0_30, %c0_31], %65 {strides = array<i32>} : memref<1x8x128xf32, #tpu.memory_space<vmem>>, vector<1x8x128xf32>,
    return
  }
  func.func @transform_0(%arg0: i32, %arg1: i32) -> (i32, i32) {
    %c1_i32 = arith.constant 1 : i32
    %0 = arith.muli %arg0, %c1_i32 : i32
    %1 = arith.addi %0, %arg1 : i32
    %c1_i32_0 = arith.constant 1 : i32
    %2 = arith.minsi %1, %c1_i32_0 : i32
    %c0_i32 = arith.constant 0 : i32
    %c0_i32_1 = arith.constant 0 : i32
    return %2, %c0_i32 : i32, i32
  }
  func.func @transform_1(%arg0: i32, %arg1: i32) -> (i32, i32) {
    %c1_i32 = arith.constant 1 : i32
    %0 = arith.muli %arg0, %c1_i32 : i32
    %1 = arith.addi %0, %arg1 : i32
    %c1_i32_0 = arith.constant 1 : i32
    %2 = arith.minsi %1, %c1_i32_0 : i32
    %c0_i32 = arith.constant 0 : i32
    %c0_i32_1 = arith.constant 0 : i32
    return %2, %c0_i32 : i32, i32
  }
  func.func @transform_2(%arg0: i32, %arg1: i32) -> (i32, i32, i32) {
    %c0_i32 = arith.constant 0 : i32
    %c0_i32_0 = arith.constant 0 : i32
    %c0_i32_1 = arith.constant 0 : i32
    return %arg0, %c0_i32, %c0_i32_0 : i32, i32, i32
  }
  func.func @transform_3(%arg0: i32, %arg1: i32) -> (i32, i32, i32) {
    %c0_i32 = arith.constant 0 : i32
    %c0_i32_0 = arith.constant 0 : i32
    %c0_i32_1 = arith.constant 0 : i32
    return %arg0, %c0_i32, %c0_i32_0 : i32, i32, i32
  }
  func.func @transform_4(%arg0: i32, %arg1: i32) -> (i32, i32, i32) {
    %c0_i32 = arith.constant 0 : i32
    %c0_i32_0 = arith.constant 0 : i32
    %c0_i32_1 = arith.constant 0 : i32
    return %arg0, %c0_i32, %c0_i32_0 : i32, i32, i32
  }
}

</mosaic_0001>

<llo_original>
// kernel: tpu_custom_call.1
$region0: #{tpu_custom_call.1}
  #allocation0 [shape = 'u32[]', space=smem, size = 0x4, offset = 0x4, fixed_abs, tag = 'smem constant byte address 0x4 - core index']
  #allocation1 [shape = 'u32[72,128]{1,0:T(1,128)}', space=vmem, size = 0x9000, scoped, tag = 'internal scratch']
  %s0 = inlined_call_operand.hbm [shape: f32[16,128], index: 0, kind: input, shape index: {}]
  %s1 = inlined_call_operand.hbm [shape: f32[16,128], index: 1, kind: input, shape index: {}]
  %s2 = inlined_call_operand.hbm [shape: f32[2,8,128], index: 2, kind: output, shape index: {0}]
  %s3 = inlined_call_operand.hbm [shape: f32[2,8,128], index: 3, kind: output, shape index: {1}]
  %s4 = inlined_call_operand.hbm [shape: f32[2,8,128], index: 4, kind: output, shape index: {2}]
  %5 = xla_tuple %s2, %s3, %s4
  %s6 = sld [smem:[#allocation0]]
  $region69: #{tpu_custom_call.1} parent=0
    _
  %s8 = ssub.s32 1, %s6
  %s9 = scalar_select 0, %s8, %s6
  $region1: #{tpu_custom_call.1} parent=0
    #allocation2 [shape = 'u8[8192]{0}', space=vmem, size = 0x2000, scoped, tag = 'input window, operand 0']
    #allocation3 [shape = 's32[2]{0}', space=sflag, size = 0x8, scoped, tag = 'scoped memory for tpu_custom_call.1']
    #allocation4 [shape = 's32[2]{0}', space=sflag, size = 0x8, scoped, tag = 'scoped memory for tpu_custom_call.1']
    #allocation5 [shape = 'u8[8192]{0}', space=vmem, size = 0x2000, scoped, tag = 'input window, operand 1']
    #allocation6 [shape = 's32[2]{0}', space=sflag, size = 0x8, scoped, tag = 'scoped memory for tpu_custom_call.1']
    #allocation7 [shape = 'u8[8192]{0}', space=vmem, size = 0x2000, scoped, tag = 'output window, operand 0']
    #allocation8 [shape = 'u8[8192]{0}', space=vmem, size = 0x2000, scoped, tag = 'output window, operand 1']
    #allocation9 [shape = 's32[2]{0}', space=sflag, size = 0x8, scoped, tag = 'scoped memory for tpu_custom_call.1']
    #allocation10 [shape = 'u8[8192]{0}', space=vmem, size = 0x2000, scoped, tag = 'output window, operand 2']
    %10 = vsyncpa [#allocation3], 0
    %s11 = scalar_lea.sflag [#allocation3], 1
    %12 = vsyncpa %s11, 0
    %13 = vsyncpa [#allocation6], 0
    %s14 = scalar_lea.sflag [#allocation6], 1
    %15 = vsyncpa %s14, 0
    %16 = vsyncpa [#allocation4], 0
    %s17 = scalar_lea.sflag [#allocation4], 1
    %18 = vsyncpa %s17, 0
    %19 = vsyncpa [#allocation9], 0
    %s20 = scalar_lea.sflag [#allocation9], 1
    %21 = vsyncpa %s20, 0
    loop: start=0, step=1, limit=4
    $region2: #{tpu_custom_call.1} parent=1 // loop_pre_header
      _
    $region3: #{tpu_custom_call.1} parent=1 // loop_header
      %s23 = sphi 0, %s27
      %p24 = scmp.ge.s32.totalorder %s23, 4
      %s30 = sphi 0, %s42
      %s31 = sphi 0, %s38
      %s32 = sphi 0, %s30
      %s33 = sphi 0, %s31
      %s34 = sphi 0, %s32
      %s35 = sphi 0, %s33
      %s51 = sphi 0, %s53
      %s54 = sphi 0, %s51
      %s55 = sphi 0, %s54
      %s71 = sphi 0, %s55
      %s83 = sphi 0, %s85
      %s86 = sphi 0, %s83
      %s87 = sphi 0, %s86
      %s103 = sphi 0, %s87
      %s109 = sphi 0, %s111
      %s112 = sphi 0, %s109
      %s113 = sphi 0, %s112
      %s129 = sphi 0, %s113
      %s135 = sphi 0, %s137
      %s138 = sphi 0, %s135
      %s139 = sphi 0, %s138
      %s155 = sphi 0, %s139
      %s161 = sphi 0, %s163
      %s164 = sphi 0, %s161
      %s165 = sphi 0, %s164
      %s181 = sphi 0, %s165
    $region4: #{tpu_custom_call.1} parent=1 // loop_header_branch
      %26 = sbr.rel (%p24) target = $region8
    $region5: #{tpu_custom_call.1} parent=1 // loop_body
      %s28 = ssub.s32 %s23, 1
      %s29 = ssub.s32 %s23, 2
      %s36 = sadd.s32 1, %s31
      %p37 = scmp.ge.s32.totalorder %s36, 1
      %s38 = scalar_select %p37, 0, %s36
      %s39 = sadd.s32 1, %s30
      %s40 = scalar_select %p37, %s39, %s30
      %p41 = scmp.ge.s32.totalorder %s40, 2
      %s42 = scalar_select %p41, 0, %s40
      %s43 = sadd.s32 %s30, %s31
      %p44 = scmp.lt.s32.totalorder %s43, 1
      %s45 = scalar_select %p44, %s43, 1
      %s46 = sadd.s32 %s42, %s38
      %p47 = scmp.lt.s32.totalorder %s46, 1
      %s48 = scalar_select %p47, %s46, 1
      %s49 = ssub.s32 %s45, %s48
      %p50 = scmp.eq.s32.totalorder %s49, 0
      %s52 = sadd.s32 %s51, 1
      %s53 = scalar_select %p50, %s51, %s52
      %p56 = pneg %p50
      %p57 = scmp.eq.s32.totalorder %s23, 1
      %p58 = por %p56, %p57
      %p59 = scmp.ne.s32.totalorder %s51, %s54
      %p60 = scmp.eq.s32.totalorder %s23, 0
      %p61 = por %p59, %p60
      %p62 = scmp.ne.s32.totalorder %s51, %s54
      %p63 = scmp.eq.s32.totalorder %s28, 1
      %p64 = por %p62, %p63
      %p65 = scmp.ne.s32.totalorder %s54, %s55
      %p66 = scmp.eq.s32.totalorder %s28, 0
      %p67 = por %p65, %p66
      %p68 = scmp.ne.s32.totalorder %s54, %s55
      %p69 = scmp.eq.s32.totalorder %s29, 1
      %p70 = por %p68, %p69
      %p72 = scmp.ne.s32.totalorder %s55, %s71
      %p73 = scmp.eq.s32.totalorder %s29, 0
      %p74 = por %p72, %p73
      %s75 = sadd.s32 %s30, %s31
      %p76 = scmp.lt.s32.totalorder %s75, 1
      %s77 = scalar_select %p76, %s75, 1
      %s78 = sadd.s32 %s42, %s38
      %p79 = scmp.lt.s32.totalorder %s78, 1
      %s80 = scalar_select %p79, %s78, 1
      %s81 = ssub.s32 %s77, %s80
      %p82 = scmp.eq.s32.totalorder %s81, 0
      %s84 = sadd.s32 %s83, 1
      %s85 = scalar_select %p82, %s83, %s84
      %p88 = pneg %p82
      %p89 = scmp.eq.s32.totalorder %s23, 1
      %p90 = por %p88, %p89
      %p91 = scmp.ne.s32.totalorder %s83, %s86
      %p92 = scmp.eq.s32.totalorder %s23, 0
      %p93 = por %p91, %p92
      %p94 = scmp.ne.s32.totalorder %s83, %s86
      %p95 = scmp.eq.s32.totalorder %s28, 1
      %p96 = por %p94, %p95
      %p97 = scmp.ne.s32.totalorder %s86, %s87
      %p98 = scmp.eq.s32.totalorder %s28, 0
      %p99 = por %p97, %p98
      %p100 = scmp.ne.s32.totalorder %s86, %s87
      %p101 = scmp.eq.s32.totalorder %s29, 1
      %p102 = por %p100, %p101
      %p104 = scmp.ne.s32.totalorder %s87, %s103
      %p105 = scmp.eq.s32.totalorder %s29, 0
      %p106 = por %p104, %p105
      %s107 = ssub.s32 %s30, %s42
      %p108 = scmp.eq.s32.totalorder %s107, 0
      %s110 = sadd.s32 %s109, 1
      %s111 = scalar_select %p108, %s109, %s110
      %p114 = pneg %p108
      %p115 = scmp.eq.s32.totalorder %s23, 1
      %p116 = por %p114, %p115
      %p117 = scmp.ne.s32.totalorder %s109, %s112
      %p118 = scmp.eq.s32.totalorder %s23, 0
      %p119 = por %p117, %p118
      %p120 = scmp.ne.s32.totalorder %s109, %s112
      %p121 = scmp.eq.s32.totalorder %s28, 1
      %p122 = por %p120, %p121
      %p123 = scmp.ne.s32.totalorder %s112, %s113
      %p124 = scmp.eq.s32.totalorder %s28, 0
      %p125 = por %p123, %p124
      %p126 = scmp.ne.s32.totalorder %s112, %s113
      %p127 = scmp.eq.s32.totalorder %s29, 1
      %p128 = por %p126, %p127
      %p130 = scmp.ne.s32.totalorder %s113, %s129
      %p131 = scmp.eq.s32.totalorder %s29, 0
      %p132 = por %p130, %p131
      %s133 = ssub.s32 %s30, %s42
      %p134 = scmp.eq.s32.totalorder %s133, 0
      %s136 = sadd.s32 %s135, 1
      %s137 = scalar_select %p134, %s135, %s136
      %p140 = pneg %p134
      %p141 = scmp.eq.s32.totalorder %s23, 1
      %p142 = por %p140, %p141
      %p143 = scmp.ne.s32.totalorder %s135, %s138
      %p144 = scmp.eq.s32.totalorder %s23, 0
      %p145 = por %p143, %p144
      %p146 = scmp.ne.s32.totalorder %s135, %s138
      %p147 = scmp.eq.s32.totalorder %s28, 1
      %p148 = por %p146, %p147
      %p149 = scmp.ne.s32.totalorder %s138, %s139
      %p150 = scmp.eq.s32.totalorder %s28, 0
      %p151 = por %p149, %p150
      %p152 = scmp.ne.s32.totalorder %s138, %s139
      %p153 = scmp.eq.s32.totalorder %s29, 1
      %p154 = por %p152, %p153
      %p156 = scmp.ne.s32.totalorder %s139, %s155
      %p157 = scmp.eq.s32.totalorder %s29, 0
      %p158 = por %p156, %p157
      %s159 = ssub.s32 %s30, %s42
      %p160 = scmp.eq.s32.totalorder %s159, 0
      %s162 = sadd.s32 %s161, 1
      %s163 = scalar_select %p160, %s161, %s162
      %p166 = pneg %p160
      %p167 = scmp.eq.s32.totalorder %s23, 1
      %p168 = por %p166, %p167
      %p169 = scmp.ne.s32.totalorder %s161, %s164
      %p170 = scmp.eq.s32.totalorder %s23, 0
      %p171 = por %p169, %p170
      %p172 = scmp.ne.s32.totalorder %s161, %s164
      %p173 = scmp.eq.s32.totalorder %s28, 1
      %p174 = por %p172, %p173
      %p175 = scmp.ne.s32.totalorder %s164, %s165
      %p176 = scmp.eq.s32.totalorder %s28, 0
      %p177 = por %p175, %p176
      %p178 = scmp.ne.s32.totalorder %s164, %s165
      %p179 = scmp.eq.s32.totalorder %s29, 1
      %p180 = por %p178, %p179
      %p182 = scmp.ne.s32.totalorder %s165, %s181
      %p183 = scmp.eq.s32.totalorder %s29, 0
      %p184 = por %p182, %p183
      %p185 = scmp.le.s32.totalorder 1, %s23
      %p186 = scmp.lt.s32.totalorder %s23, 3
      %p187 = pnand %p185, %p186
      %p188 = pneg %p187
      // Predicated region
      $region9: #{tpu_custom_call.1} parent=5 // pred_check
        _
      $region10: #{tpu_custom_call.1} parent=5 // pred_check_branch
        %190 = sbr.rel (%p187) target = $region12
      $region11: #{tpu_custom_call.1} parent=5 // pred_region
        %s191 = ssub.s32 %s23, 1
      $region12: #{tpu_custom_call.1} parent=5 // pred_fallthru
        _
      %p192 = scmp.lt.s32.totalorder %s23, 2
      // Predicated region
      $region13: #{tpu_custom_call.1} parent=5 // pred_check
        %p193 = pneg %p192
      $region14: #{tpu_custom_call.1} parent=5 // pred_check_branch
        %195 = sbr.rel (%p193) target = $region16
      $region15: #{tpu_custom_call.1} parent=5 // pred_region
        // Predicated region
        $region17: #{tpu_custom_call.1} parent=15 // pred_check
          %p196 = pneg %p61
        $region18: #{tpu_custom_call.1} parent=15 // pred_check_branch
          %198 = sbr.rel (%p196) target = $region20
        $region19: #{tpu_custom_call.1} parent=15 // pred_region
          %s199 = sand.u32 %s51, 1
          %s200 = scalar_lea.sflag [#allocation3], %s199
          %s201 = sand.u32 %s51, 1
          %s202 = smul.addr %s201, 8
          %s203 = scalar_lea.vmem [#allocation2], %s202
          %s204 = sadd.s32 %s30, %s31
          %p205 = scmp.lt.s32.totalorder %s204, 1
          %s206 = scalar_select %p205, %s204, 1
          %208 = vsyncadd %s200, 0
          %s209 = smul.addr %s206, 8
          %s210 = scalar_lea.hbm %s0, %s209
          %s212 = sshll.u32 %s210, 4
          %s213 = int_to_ptr.hbm [resolvable:$true] %s212
          %s214 = sshll.u32 %s203, 4
          %s215 = int_to_ptr.vmem [resolvable:$true] %s214
          %217 = dma.hbm_to_vmem [thread:$0]  %s213, 128, %s215, %s200
        $region20: #{tpu_custom_call.1} parent=15 // pred_fallthru
          _
        // Predicated region
        $region21: #{tpu_custom_call.1} parent=15 // pred_check
          %p218 = pneg %p93
        $region22: #{tpu_custom_call.1} parent=15 // pred_check_branch
          %220 = sbr.rel (%p218) target = $region24
        $region23: #{tpu_custom_call.1} parent=15 // pred_region
          %s221 = sand.u32 %s83, 1
          %s222 = scalar_lea.sflag [#allocation6], %s221
          %s223 = sand.u32 %s83, 1
          %s224 = smul.addr %s223, 8
          %s225 = scalar_lea.vmem [#allocation5], %s224
          %s226 = sadd.s32 %s30, %s31
          %p227 = scmp.lt.s32.totalorder %s226, 1
          %s228 = scalar_select %p227, %s226, 1
          %230 = vsyncadd %s222, 0
          %s231 = smul.addr %s228, 8
          %s232 = scalar_lea.hbm %s1, %s231
          %s234 = sshll.u32 %s232, 4
          %s235 = int_to_ptr.hbm [resolvable:$true] %s234
          %s236 = sshll.u32 %s225, 4
          %s237 = int_to_ptr.vmem [resolvable:$true] %s236
          %239 = dma.hbm_to_vmem [thread:$0]  %s235, 128, %s237, %s222
        $region24: #{tpu_custom_call.1} parent=15 // pred_fallthru
          _
      $region16: #{tpu_custom_call.1} parent=5 // pred_fallthru
        _
      %p240 = scmp.le.s32.totalorder 1, %s23
      %p241 = scmp.lt.s32.totalorder %s23, 3
      %p242 = pnand %p240, %p241
      %p243 = pneg %p242
      // Predicated region
      $region25: #{tpu_custom_call.1} parent=5 // pred_check
        _
      $region26: #{tpu_custom_call.1} parent=5 // pred_check_branch
        %245 = sbr.rel (%p242) target = $region28
      $region27: #{tpu_custom_call.1} parent=5 // pred_region
        %s246 = ssub.s32 %s23, 1
        %s247 = sand.u32 %s54, 1
        %s248 = scalar_lea.sflag [#allocation3], %s247
        %s249 = sand.u32 %s54, 1
        %s250 = smul.addr %s249, 8
        %s251 = scalar_lea.vmem [#allocation2], %s250
        // Predicated region
        $region29: #{tpu_custom_call.1} parent=27 // pred_check
          %p252 = pneg %p67
        $region30: #{tpu_custom_call.1} parent=27 // pred_check_branch
          %254 = sbr.rel (%p252) target = $region32
        $region31: #{tpu_custom_call.1} parent=27 // pred_region
          %256 = dma.done %s248, 128
        $region32: #{tpu_custom_call.1} parent=27 // pred_fallthru
          _
        %s257 = sand.u32 %s86, 1
        %s258 = scalar_lea.sflag [#allocation6], %s257
        %s259 = sand.u32 %s86, 1
        %s260 = smul.addr %s259, 8
        %s261 = scalar_lea.vmem [#allocation5], %s260
        // Predicated region
        $region33: #{tpu_custom_call.1} parent=27 // pred_check
          %p262 = pneg %p99
        $region34: #{tpu_custom_call.1} parent=27 // pred_check_branch
          %264 = sbr.rel (%p262) target = $region36
        $region35: #{tpu_custom_call.1} parent=27 // pred_region
          %266 = dma.done %s258, 128
        $region36: #{tpu_custom_call.1} parent=27 // pred_fallthru
          _
        %s267 = sand.u32 %s54, 1
        %s268 = scalar_lea.sflag [#allocation3], %s267
        %s269 = sand.u32 %s54, 1
        %s270 = smul.addr %s269, 8
        %s271 = scalar_lea.vmem [#allocation2], %s270
        %p272 = pneg %p67
        %p273 = pneg %p64
        %s274 = sand.u32 %s86, 1
        %s275 = scalar_lea.sflag [#allocation6], %s274
        %s276 = sand.u32 %s86, 1
        %s277 = smul.addr %s276, 8
        %s278 = scalar_lea.vmem [#allocation5], %s277
        %p279 = pneg %p99
        %p280 = pneg %p96
        %p281 = pneg %p125
        %p282 = pneg %p122
        %s283 = sand.u32 %s112, 1
        %s284 = scalar_lea.sflag [#allocation4], %s283
        %s285 = sand.u32 %s112, 1
        %s286 = smul.addr %s285, 8
        %s287 = scalar_lea.vmem [#allocation7], %s286
        %p288 = pneg %p151
        %p289 = pneg %p148
        %s290 = sand.u32 %s28, 1
        %s291 = scalar_lea.sflag [#allocation9], %s290
        %s292 = sand.u32 %s138, 1
        %s293 = smul.addr %s292, 8
        %s294 = scalar_lea.vmem [#allocation8], %s293
        %p295 = pneg %p177
        %p296 = pneg %p174
        %s297 = sand.u32 %s28, 1
        %s298 = scalar_lea.sflag [#allocation9], %s297
        %s299 = sand.u32 %s164, 1
        %s300 = smul.addr %s299, 8
        %s301 = scalar_lea.vmem [#allocation10], %s300
        %s302 = sadd.s32 %s32, %s33
        %p303 = scmp.lt.s32.totalorder %s302, 1
        %s304 = scalar_select %p303, %s302, 1
        %s305 = sadd.s32 %s32, %s33
        %p306 = scmp.lt.s32.totalorder %s305, 1
        %s307 = scalar_select %p306, %s305, 1
        %p308 = scmp.eq.s32.totalorder %s33, 0
        // Predicated region
        $region37: #{tpu_custom_call.1} parent=27 // pred_check
          %p309 = pneg %p308
        $region38: #{tpu_custom_call.1} parent=27 // pred_check_branch
          %311 = sbr.rel (%p309) target = $region40
        $region39: #{tpu_custom_call.1} parent=27 // pred_region
          %312 = vst [vmem:[%s287] sm:$0xff] 0.0
          %313 = vst [vmem:[%s294] sm:$0xff] 0.0
          %314 = vst [vmem:[%s301] sm:$0xff] 0.0
        $region40: #{tpu_custom_call.1} parent=27 // pred_fallthru
          _
        %s315 = sadd.s32 %s32, %s33
        %v316 = vlaneseq
        %v317 = vshrl.u32 %v316, 7
        %v318 = vld [vmem:[%s251] sm:$0xff]
        %v319 = vld [vmem:[%s261] sm:$0xff]
        %s320 = smul.u32 %s315, 8
        %s321 = ssub.s32 16, %s320
        %v322 = vstv %s321
        %vm323 = vcmp.lt.s32.totalorder %v317, %v322
        %v324 = vsub.f32 %v318, %v319
        %v325 = vsel %vm323, %v324, 0.0
        %vm326 = vcmp.gt.f32.partialorder %v318, %v319
        %vm327 = vmand %vm326, %vm323
        %v328 = vsel %vm327, 1, 0
        %v329 = vcvt.s32.f32 %v328
        %v330 = vmax.f32 %v325, 0.0
        %v331 = vmul.f32 %v330, -2.0
        %v332 = vmul.f32 %v331, 1.442695
        %v333 = vpow.pop %v332
        %v334 = vadd.f32 %v333, 1.0
        %v335 = vlog2.pop %v334
        %v336 = vmul.f32 %v335, 0.6931472
        %v337 = vadd.f32 %v330, %v336
        %v338 = vsub.f32 %v337, 0.6931472
        %v339 = vmul.f32 %v338, %v329
        %v340 = vmul.f32 %v325, %v325
        %v341 = vadd.f32 %v340, 0.0
        %v342 = vadd.f32 %v341, 0.0
        %v343 = vadd.f32 %v339, 0.0
        %v344 = vadd.f32 %v343, 0.0
        %v345 = vadd.f32 %v329, 0.0
        %v346 = vadd.f32 %v345, 0.0
        %v347 = vld [vmem:[%s287] sm:$0xff]
        %v348 = vadd.f32 %v347, %v342
        %349 = vst [vmem:[%s287] sm:$0xff] %v348
        %v350 = vld [vmem:[%s294] sm:$0xff]
        %v351 = vadd.f32 %v350, %v344
        %352 = vst [vmem:[%s294] sm:$0xff] %v351
        %v353 = vld [vmem:[%s301] sm:$0xff]
        %v354 = vadd.f32 %v353, %v346
        %355 = vst [vmem:[%s301] sm:$0xff] %v354
        %s356 = sand.u32 %s112, 1
        %s357 = scalar_lea.sflag [#allocation4], %s356
        %s358 = sand.u32 %s112, 1
        %s359 = smul.addr %s358, 8
        %s360 = scalar_lea.vmem [#allocation7], %s359
        %s361 = sand.u32 %s28, 1
        %s362 = scalar_lea.sflag [#allocation9], %s361
        %s363 = sand.u32 %s138, 1
        %s364 = smul.addr %s363, 8
        %s365 = scalar_lea.vmem [#allocation8], %s364
        %s366 = sand.u32 %s28, 1
        %s367 = scalar_lea.sflag [#allocation9], %s366
        %s368 = sand.u32 %s164, 1
        %s369 = smul.addr %s368, 8
        %s370 = scalar_lea.vmem [#allocation10], %s369
        // Predicated region
        $region41: #{tpu_custom_call.1} parent=27 // pred_check
          %p371 = pneg %p122
        $region42: #{tpu_custom_call.1} parent=27 // pred_check_branch
          %373 = sbr.rel (%p371) target = $region44
        $region43: #{tpu_custom_call.1} parent=27 // pred_region
          %375 = vsyncadd %s357, 0
          %s376 = smul.addr %s32, 8
          %s377 = scalar_lea.hbm %s2, %s376
          %s379 = sshll.u32 %s360, 4
          %s380 = int_to_ptr.vmem [resolvable:$true] %s379
          %s381 = sshll.u32 %s377, 4
          %s382 = int_to_ptr.hbm [resolvable:$true] %s381
          %384 = dma.vmem_to_hbm [thread:$0]  %s380, 128, %s382, %s357
        $region44: #{tpu_custom_call.1} parent=27 // pred_fallthru
          _
        // Predicated region
        $region45: #{tpu_custom_call.1} parent=27 // pred_check
          %p385 = pneg %p148
        $region46: #{tpu_custom_call.1} parent=27 // pred_check_branch
          %387 = sbr.rel (%p385) target = $region48
        $region47: #{tpu_custom_call.1} parent=27 // pred_region
          %389 = vsyncadd %s362, 0
          %s390 = smul.addr %s32, 8
          %s391 = scalar_lea.hbm %s3, %s390
          %s393 = sshll.u32 %s365, 4
          %s394 = int_to_ptr.vmem [resolvable:$true] %s393
          %s395 = sshll.u32 %s391, 4
          %s396 = int_to_ptr.hbm [resolvable:$true] %s395
          %398 = dma.vmem_to_hbm [thread:$0]  %s394, 128, %s396, %s362
        $region48: #{tpu_custom_call.1} parent=27 // pred_fallthru
          _
        // Predicated region
        $region49: #{tpu_custom_call.1} parent=27 // pred_check
          %p399 = pneg %p174
        $region50: #{tpu_custom_call.1} parent=27 // pred_check_branch
          %401 = sbr.rel (%p399) target = $region52
        $region51: #{tpu_custom_call.1} parent=27 // pred_region
          %403 = vsyncadd %s367, 0
          %s404 = smul.addr %s32, 8
          %s405 = scalar_lea.hbm %s4, %s404
          %s407 = sshll.u32 %s370, 4
          %s408 = int_to_ptr.vmem [resolvable:$true] %s407
          %s409 = sshll.u32 %s405, 4
          %s410 = int_to_ptr.hbm [resolvable:$true] %s409
          %412 = dma.vmem_to_hbm [thread:$0]  %s408, 128, %s410, %s367
        $region52: #{tpu_custom_call.1} parent=27 // pred_fallthru
          _
      $region28: #{tpu_custom_call.1} parent=5 // pred_fallthru
        _
      %p413 = scmp.le.s32.totalorder 2, %s23
      // Predicated region
      $region53: #{tpu_custom_call.1} parent=5 // pred_check
        %p414 = pneg %p413
      $region54: #{tpu_custom_call.1} parent=5 // pred_check_branch
        %416 = sbr.rel (%p414) target = $region56
      $region55: #{tpu_custom_call.1} parent=5 // pred_region
        %s417 = ssub.s32 %s23, 2
        // Predicated region
        $region57: #{tpu_custom_call.1} parent=55 // pred_check
          %p418 = pneg %p128
        $region58: #{tpu_custom_call.1} parent=55 // pred_check_branch
          %420 = sbr.rel (%p418) target = $region60
        $region59: #{tpu_custom_call.1} parent=55 // pred_region
          %s421 = sand.u32 %s113, 1
          %s422 = scalar_lea.sflag [#allocation4], %s421
          %s423 = sand.u32 %s113, 1
          %s424 = smul.addr %s423, 8
          %s425 = scalar_lea.vmem [#allocation7], %s424
          %427 = dma.done %s422, 128
        $region60: #{tpu_custom_call.1} parent=55 // pred_fallthru
          _
        // Predicated region
        $region61: #{tpu_custom_call.1} parent=55 // pred_check
          %p428 = pneg %p154
        $region62: #{tpu_custom_call.1} parent=55 // pred_check_branch
          %430 = sbr.rel (%p428) target = $region64
        $region63: #{tpu_custom_call.1} parent=55 // pred_region
          %s431 = sand.u32 %s29, 1
          %s432 = scalar_lea.sflag [#allocation9], %s431
          %s433 = sand.u32 %s139, 1
          %s434 = smul.addr %s433, 8
          %s435 = scalar_lea.vmem [#allocation8], %s434
          %437 = dma.done %s432, 128
        $region64: #{tpu_custom_call.1} parent=55 // pred_fallthru
          _
        // Predicated region
        $region65: #{tpu_custom_call.1} parent=55 // pred_check
          %p438 = pneg %p180
        $region66: #{tpu_custom_call.1} parent=55 // pred_check_branch
          %440 = sbr.rel (%p438) target = $region68
        $region67: #{tpu_custom_call.1} parent=55 // pred_region
          %s441 = sand.u32 %s29, 1
          %s442 = scalar_lea.sflag [#allocation9], %s441
          %s443 = sand.u32 %s165, 1
          %s444 = smul.addr %s443, 8
          %s445 = scalar_lea.vmem [#allocation10], %s444
          %447 = dma.done %s442, 128
        $region68: #{tpu_custom_call.1} parent=55 // pred_fallthru
          _
      $region56: #{tpu_custom_call.1} parent=5 // pred_fallthru
        _
    $region6: #{tpu_custom_call.1} parent=1 // loop_footer
      %s27 = sadd.s32 1, %s23
    $region7: #{tpu_custom_call.1} parent=1 // loop_footer_branch
      %22 = sbr.rel target = $region3
    $region8: #{tpu_custom_call.1} parent=1 // loop_exit
      _
    %448 = vsyncpa [#allocation3], 1
    %s449 = scalar_lea.sflag [#allocation3], 1
    %450 = vsyncpa %s449, 1
    %451 = vsyncpa [#allocation6], 1
    %s452 = scalar_lea.sflag [#allocation6], 1
    %453 = vsyncpa %s452, 1
    %454 = vsyncpa [#allocation4], 1
    %s455 = scalar_lea.sflag [#allocation4], 1
    %456 = vsyncpa %s455, 1
    %457 = vsyncpa [#allocation9], 1
    %s458 = scalar_lea.sflag [#allocation9], 1
    %459 = vsyncpa %s458, 1

</llo_original>
